<compile_context>
chip_gen: v7x
topology: tpu7x:2x2x1
jax: 0.10.0
libtpu: 0.0.40
codegen_flags: <defaults>
</compile_context>

<pallas_src>
import functools

import jax
import jax.numpy as jnp
import numpy as np
from jax.experimental import pallas as pl
from jax.experimental.pallas import tpu as pltpu


def _methane_kernel(
    x_ref,                    # (d_in, tile)      x^T block, batch on lanes (f32 or bf16)
    wcat_ref,                 # (144, d_in)       fc1(+BN1-folded) rows | skip rows
    w2_ref,                   # (64, 128)         fc2, BN2-folded
    w3_ref,                   # (16, 64)          fc3, BN3-folded
    wo_ref,                   # (16, 1)           output linear weights (column, f32)
    b_ref,                    # (225, 1)          merged biases [bcat | b2 | b3 | bo]
    o_ref,                    # (1, tile)         softplus output, batch on lanes
    *, hidden1, n_skip, n2, n3,
):
    f32 = jnp.float32
    n_cat = hidden1 + n_skip
    xT = x_ref[...]                                             # (d_in, tile)

    # Fused fc1|skip matmul: both branches share RHS x^T.  BN1 is already folded
    # into the fc1 rows; ReLU applies to both branches, so apply it once.
    zcat = jnp.dot(wcat_ref[...], xT, preferred_element_type=f32)
    zcat = jnp.maximum(zcat + b_ref[0:n_cat, :], 0.0)           # (144, tile)
    h = zcat[:hidden1, :]                                       # (128, tile) fc1 branch
    skip = zcat[hidden1:, :]                                    # (16, tile)  skip branch

    # fc2 -> (folded BN2) -> ReLU     (dropout = identity in eval)
    h = jnp.dot(w2_ref[...], h.astype(w2_ref.dtype), preferred_element_type=f32)
    h = jnp.maximum(h + b_ref[n_cat:n_cat + n2, :], 0.0)        # (64, tile)

    # fc3 -> (folded BN3) -> ReLU
    h = jnp.dot(w3_ref[...], h.astype(w3_ref.dtype), preferred_element_type=f32)
    h = jnp.maximum(h + b_ref[n_cat + n2:n_cat + n2 + n3, :], 0.0)   # (16, tile)

    # residual add, then output Linear(16, 1) as VPU broadcast-mul + reduce over
    # the 16 sublanes -> (1, tile).  Avoids an M=1 MXU matmul / MRF drain.
    r = h + skip                                                # (16, tile) f32
    z = jnp.sum(r * wo_ref[...], axis=0, keepdims=True)         # (1, tile)
    z = z + b_ref[n_cat + n2 + n3:n_cat + n2 + n3 + 1, :]

    # PyTorch Softplus (beta=1, threshold=20)
    sp = jnp.where(z > 20.0, z, jnp.log1p(jnp.exp(jnp.minimum(z, 20.0))))
    o_ref[...] = sp


def _round_up(n, m):
    return (n + m - 1) // m * m


@functools.partial(jax.jit, static_argnames=("batch_tile", "use_bf16", "training"))
def methane_resnet_forward(x, params, *, batch_tile=2048, use_bf16=True, training=False):
    """x: (B, input_size) float32.  params: dict of PyTorch-convention tensors.

    Eval-mode semantics only (dropout = identity, BN uses running stats).
    use_bf16=True (default) casts x and the weight matrices to bf16 for the MXU;
    accumulation and all elementwise math stay f32.  Set use_bf16=False for
    bit-accurate f32 matmuls.
    """
    if training:
        raise NotImplementedError(
            "MethaneResNet Pallas kernel implements eval-mode semantics only "
            "(dropout identity, BatchNorm running stats).")
    assert batch_tile % 128 == 0, "batch_tile must be a multiple of 128 (lane tile)"

    B, d_in = x.shape
    eps = 1e-5
    f32 = jnp.float32

    def fold_linear_bn(w, b, gamma, beta, mean, var):
        # BN(W x + b) == (s*W) x + (s*b + beta - s*mean),  s = g/sqrt(v+eps)
        s = gamma / jnp.sqrt(var + eps)
        return (w * s[:, None]).astype(f32), ((b * s + beta - mean * s)[:, None]).astype(f32)

    w1, b1 = fold_linear_bn(params["fc1_w"], params["fc1_b"],
                            params["bn1_g"], params["bn1_b"], params["bn1_m"], params["bn1_v"])
    w2, b2 = fold_linear_bn(params["fc2_w"], params["fc2_b"],
                            params["bn2_g"], params["bn2_b"], params["bn2_m"], params["bn2_v"])
    w3, b3 = fold_linear_bn(params["fc3_w"], params["fc3_b"],
                            params["bn3_g"], params["bn3_b"], params["bn3_m"], params["bn3_v"])
    ws = params["skip_w"].astype(f32)                       # (16, d_in)
    bs = params["skip_b"][:, None].astype(f32)              # (16, 1)

    hidden1 = params["fc1_w"].shape[0]                      # 128 (lane-tile aligned slice)
    n_skip = params["skip_w"].shape[0]                      # 16
    n2 = params["fc2_w"].shape[0]                           # 64
    n3 = params["fc3_w"].shape[0]                           # 16
    n_cat = hidden1 + n_skip

    wcat = jnp.concatenate([w1, ws], axis=0)                # (144, d_in)
    wo_col = params["out_w"].reshape(-1, 1).astype(f32)     # (16, 1)
    bo = params["out_b"].reshape(1, 1).astype(f32)          # (1, 1)
    # Merge all biases into one column operand; slice offsets (144/208/224) are
    # static and sublane-aligned (multiples of 8).
    bias = jnp.concatenate([jnp.concatenate([b1, bs], axis=0), b2, b3, bo], axis=0)  # (225,1)

    # Optional bf16 matmul operands; accumulation & elementwise stay f32.
    mm_dtype = jnp.bfloat16 if use_bf16 else f32
    xT = x.T.astype(mm_dtype)                               # (d_in, B)  batch-on-lanes
    wcat_k, w2_k, w3_k = (w.astype(mm_dtype) for w in (wcat, w2, w3))

    # Tile & pad batch (handles ragged B; padded columns are sliced off afterwards).
    b128 = _round_up(B, 128)
    tile = min(batch_tile, b128)
    # Prefer >=2 grid steps when the batch allows it, so the "parallel" grid axis
    # actually splits across v7x's two TensorCores (no-op constraint on v5e/v6e).
    if b128 // tile < 2 and tile >= 256:
        tile = _round_up((b128 + 1) // 2, 128)
    Bp = _round_up(B, tile)
    if Bp != B:
        xT = jnp.pad(xT, ((0, 0), (0, Bp - B)))
    nt = Bp // tile

    def full_spec(a):
        return pl.BlockSpec(a.shape, lambda i: (0,) * a.ndim)

    consts = (wcat_k, w2_k, w3_k, wo_col, bias)
    in_specs = [pl.BlockSpec((d_in, tile), lambda i: (0, i))]
    in_specs += [full_spec(a) for a in consts]

    weight_bytes = sum(int(a.size) * a.dtype.itemsize for a in consts)
    cost = pl.CostEstimate(
        flops=2 * Bp * (d_in * n_cat + hidden1 * n2 + n2 * n3 + n3),
        transcendentals=2 * Bp,                       # exp + log1p per sample
        bytes_accessed=Bp * d_in * xT.dtype.itemsize + Bp * 4 + weight_bytes,
    )

    out = pl.pallas_call(
        functools.partial(_methane_kernel, hidden1=hidden1, n_skip=n_skip, n2=n2, n3=n3),
        out_shape=jax.ShapeDtypeStruct((1, Bp), jnp.float32),
        grid_spec=pltpu.PrefetchScalarGridSpec(
            num_scalar_prefetch=0,
            grid=(nt,),
            in_specs=in_specs,
            out_specs=pl.BlockSpec((1, tile), lambda i: (0, i)),
        ),
        compiler_params=pltpu.CompilerParams(dimension_semantics=("parallel",)),
        cost_estimate=cost,
    )(xT, *consts)

    # (1, Bp) row-major is already batch order -> free reshape, then unpad.
    return out.reshape(Bp, 1)[:B]


def init_params(key, input_size):
    ks = jax.random.split(key, 16)
    n = lambda k, shape, scale=0.1: (scale * jax.random.normal(k, shape)).astype(jnp.float32)
    params = {
        # PyTorch Linear convention: weight (out, in), bias (out,)
        "fc1_w": n(ks[0], (128, input_size)), "fc1_b": n(ks[1], (128,)),
        "fc2_w": n(ks[2], (64, 128)),         "fc2_b": n(ks[3], (64,)),
        "fc3_w": n(ks[4], (16, 64)),          "fc3_b": n(ks[5], (16,)),
        "out_w": n(ks[6], (1, 16)),           "out_b": n(ks[7], (1,)),
        "skip_w": n(ks[8], (16, input_size)), "skip_b": n(ks[9], (16,)),
        # BatchNorm1d params + running stats (eval mode)
        "bn1_g": 1.0 + n(ks[10], (128,)), "bn1_b": n(ks[11], (128,)),
        "bn1_m": n(ks[12], (128,)),       "bn1_v": 1.0 + jnp.abs(n(ks[13], (128,))),
        "bn2_g": 1.0 + n(ks[14], (64,)),  "bn2_b": n(ks[15], (64,)),
        "bn2_m": jnp.zeros((64,), jnp.float32),  "bn2_v": jnp.ones((64,), jnp.float32),
        "bn3_g": jnp.ones((16,), jnp.float32),   "bn3_b": jnp.zeros((16,), jnp.float32),
        "bn3_m": jnp.zeros((16,), jnp.float32),  "bn3_v": jnp.ones((16,), jnp.float32),
    }
    return params


def reference_forward(x, params):
    """Pure-JAX reference (eval-mode PyTorch semantics) for verification."""
    eps = 1e-5
    lin = lambda h, w, b: h @ w.T + b
    bn = lambda h, g, b, m, v: (h - m) / jnp.sqrt(v + eps) * g + b
    skip = jax.nn.relu(lin(x, params["skip_w"], params["skip_b"]))
    h = jax.nn.relu(bn(lin(x, params["fc1_w"], params["fc1_b"]),
                       params["bn1_g"], params["bn1_b"], params["bn1_m"], params["bn1_v"]))
    h = jax.nn.relu(bn(lin(h, params["fc2_w"], params["fc2_b"]),
                       params["bn2_g"], params["bn2_b"], params["bn2_m"], params["bn2_v"]))
    h = jax.nn.relu(bn(lin(h, params["fc3_w"], params["fc3_b"]),
                       params["bn3_g"], params["bn3_b"], params["bn3_m"], params["bn3_v"]))
    z = lin(h + skip, params["out_w"], params["out_b"])
    return jnp.where(z > 20.0, z, jnp.log1p(jnp.exp(jnp.minimum(z, 20.0))))


if __name__ == "__main__":
    key = jax.random.PRNGKey(0)
    k_x, k_p, k_x2 = jax.random.split(key, 3)

    input_size = 32
    batch = 16
    x = jax.random.normal(k_x, (batch, input_size), dtype=jnp.float32)
    params = init_params(k_p, input_size)
    ref = jax.block_until_ready(reference_forward(x, params))

    # exact f32 matmul path (single 128-padded tile)
    out = jax.block_until_ready(methane_resnet_forward(x, params, use_bf16=False))
    assert out.shape == (batch, 1)
    np.testing.assert_allclose(np.asarray(out), np.asarray(ref), rtol=1e-5, atol=1e-5)

    # default path: bf16 matmul operands (all generations), f32 accumulation/elementwise
    out_bf = jax.block_until_ready(methane_resnet_forward(x, params))
    np.testing.assert_allclose(np.asarray(out_bf), np.asarray(ref), rtol=5e-2, atol=5e-2)

    # ragged batch + multi-step grid (exercises 128-padding and >=2 grid iterations)
    xr = jax.random.normal(k_x2, (300, input_size), dtype=jnp.float32)
    ref_r = jax.block_until_ready(reference_forward(xr, params))
    out_r = jax.block_until_ready(
        methane_resnet_forward(xr, params, batch_tile=128, use_bf16=False))
    np.testing.assert_allclose(np.asarray(out_r), np.asarray(ref_r), rtol=1e-5, atol=1e-5)

    # big-tile path with the >=2-grid-step split heuristic (tile capped so nt=2)
    out_r2 = jax.block_until_ready(
        methane_resnet_forward(xr, params, batch_tile=2048, use_bf16=False))
    np.testing.assert_allclose(np.asarray(out_r2), np.asarray(ref_r), rtol=1e-5, atol=1e-5)

    print("KERNEL_OK")
</pallas_src>

<mosaic_0001>
module attributes {stable_mosaic.version = 11 : i64} {
  func.func @_methane_kernel(%arg0: i32, %arg1: memref<32x128xf32, #tpu.memory_space<vmem>>, %arg2: memref<144x32xf32, #tpu.memory_space<vmem>>, %arg3: memref<64x128xf32, #tpu.memory_space<vmem>>, %arg4: memref<16x64xf32, #tpu.memory_space<vmem>>, %arg5: memref<16x1xf32, #tpu.memory_space<vmem>>, %arg6: memref<225x1xf32, #tpu.memory_space<vmem>>, %arg7: memref<1x128xf32, #tpu.memory_space<vmem>>) attributes {dimension_semantics = [#tpu.dimension_semantics<parallel>], iteration_bounds = array<i64: 1>, scalar_prefetch = 0 : i64, scratch_operands = 0 : i64, tpu.core_type = #tpu.core_type<tc>, window_params = [{transform_indices = @transform_0, window_bounds = array<i64: 32, 128>}, {pipeline_mode = #tpu.pipeline_mode<synchronous>, transform_indices = @transform_1, window_bounds = array<i64: 144, 32>}, {pipeline_mode = #tpu.pipeline_mode<synchronous>, transform_indices = @transform_2, window_bounds = array<i64: 64, 128>}, {pipeline_mode = #tpu.pipeline_mode<synchronous>, transform_indices = @transform_3, window_bounds = array<i64: 16, 64>}, {pipeline_mode = #tpu.pipeline_mode<synchronous>, transform_indices = @transform_4, window_bounds = array<i64: 16, 1>}, {pipeline_mode = #tpu.pipeline_mode<synchronous>, transform_indices = @transform_5, window_bounds = array<i64: 225, 1>}, {transform_indices = @transform_6, window_bounds = array<i64: 1, 128>}]} {
    %c0 = arith.constant 0 : index
    %c0_0 = arith.constant 0 : index
    %0 = vector.load %arg1[%c0, %c0_0] : memref<32x128xf32, #tpu.memory_space<vmem>>, vector<32x128xf32>
    %c0_1 = arith.constant 0 : index
    %c0_2 = arith.constant 0 : index
    %1 = vector.load %arg2[%c0_1, %c0_2] : memref<144x32xf32, #tpu.memory_space<vmem>>, vector<144x32xf32>
    %cst = arith.constant dense<0.000000e+00> : vector<144x128xf32>
    %2 = tpu.matmul %1, %0, %cst {dimension_numbers = #tpu.dot_dimension_numbers<[1], [0], [0], [1], [0, 0, 1, 1], [], []>} : vector<144x32xf32>, vector<32x128xf32>, vector<144x128xf32> -> vector<144x128xf32>
    %c0_3 = arith.constant 0 : index
    %c0_4 = arith.constant 0 : index
    %3 = vector.load %arg6[%c0_3, %c0_4] : memref<225x1xf32, #tpu.memory_space<vmem>>, vector<144x1xf32>
    %4 = vector.broadcast %3 : vector<144x1xf32> to vector<144x128xf32>
    %5 = arith.addf %2, %4 : vector<144x128xf32>
    %cst_5 = arith.constant 0.000000e+00 : f32
    %6 = vector.broadcast %cst_5 : f32 to vector<144x128xf32>
    %7 = arith.maximumf %5, %6 : vector<144x128xf32>
    %8 = vector.extract_strided_slice %7 {offsets = [0, 0], sizes = [128, 128], strides = [1, 1]} : vector<144x128xf32> to vector<128x128xf32>
    %9 = vector.extract_strided_slice %7 {offsets = [128, 0], sizes = [16, 128], strides = [1, 1]} : vector<144x128xf32> to vector<16x128xf32>
    %c0_6 = arith.constant 0 : index
    %c0_7 = arith.constant 0 : index
    %10 = vector.load %arg3[%c0_6, %c0_7] : memref<64x128xf32, #tpu.memory_space<vmem>>, vector<64x128xf32>
    %cst_8 = arith.constant dense<0.000000e+00> : vector<64x128xf32>
    %11 = tpu.matmul %10, %8, %cst_8 {dimension_numbers = #tpu.dot_dimension_numbers<[1], [0], [0], [1], [0, 0, 1, 1], [], []>} : vector<64x128xf32>, vector<128x128xf32>, vector<64x128xf32> -> vector<64x128xf32>
    %c144 = arith.constant 144 : index
    %c0_9 = arith.constant 0 : index
    %12 = vector.load %arg6[%c144, %c0_9] : memref<225x1xf32, #tpu.memory_space<vmem>>, vector<64x1xf32>
    %13 = vector.broadcast %12 : vector<64x1xf32> to vector<64x128xf32>
    %14 = arith.addf %11, %13 : vector<64x128xf32>
    %cst_10 = arith.constant 0.000000e+00 : f32
    %15 = vector.broadcast %cst_10 : f32 to vector<64x128xf32>
    %16 = arith.maximumf %14, %15 : vector<64x128xf32>
    %c0_11 = arith.constant 0 : index
    %c0_12 = arith.constant 0 : index
    %17 = vector.load %arg4[%c0_11, %c0_12] : memref<16x64xf32, #tpu.memory_space<vmem>>, vector<16x64xf32>
    %cst_13 = arith.constant dense<0.000000e+00> : vector<16x128xf32>
    %18 = tpu.matmul %17, %16, %cst_13 {dimension_numbers = #tpu.dot_dimension_numbers<[1], [0], [0], [1], [0, 0, 1, 1], [], []>} : vector<16x64xf32>, vector<64x128xf32>, vector<16x128xf32> -> vector<16x128xf32>
    %c208 = arith.constant 208 : index
    %c0_14 = arith.constant 0 : index
    %19 = vector.load %arg6[%c208, %c0_14] : memref<225x1xf32, #tpu.memory_space<vmem>>, vector<16x1xf32>
    %20 = vector.broadcast %19 : vector<16x1xf32> to vector<16x128xf32>
    %21 = arith.addf %18, %20 : vector<16x128xf32>
    %cst_15 = arith.constant 0.000000e+00 : f32
    %22 = vector.broadcast %cst_15 : f32 to vector<16x128xf32>
    %23 = arith.maximumf %21, %22 : vector<16x128xf32>
    %24 = arith.addf %23, %9 : vector<16x128xf32>
    %c0_16 = arith.constant 0 : index
    %c0_17 = arith.constant 0 : index
    %25 = vector.load %arg5[%c0_16, %c0_17] : memref<16x1xf32, #tpu.memory_space<vmem>>, vector<16x1xf32>
    %26 = vector.broadcast %25 : vector<16x1xf32> to vector<16x128xf32>
    %27 = arith.mulf %24, %26 : vector<16x128xf32>
    %cst_18 = arith.constant dense<0.000000e+00> : vector<128xf32>
    %28 = vector.multi_reduction <add>, %27, %cst_18 [0] : vector<16x128xf32> to vector<128xf32>
    %29 = vector.shape_cast %28 : vector<128xf32> to vector<1x128xf32>
    %c224 = arith.constant 224 : index
    %c0_19 = arith.constant 0 : index
    %30 = vector.load %arg6[%c224, %c0_19] : memref<225x1xf32, #tpu.memory_space<vmem>>, vector<1x1xf32>
    %31 = vector.broadcast %30 : vector<1x1xf32> to vector<1x128xf32>
    %32 = arith.addf %29, %31 : vector<1x128xf32>
    %cst_20 = arith.constant 2.000000e+01 : f32
    %33 = vector.broadcast %cst_20 : f32 to vector<1x128xf32>
    %34 = arith.cmpf ogt, %32, %33 : vector<1x128xf32>
    %cst_21 = arith.constant 2.000000e+01 : f32
    %35 = vector.broadcast %cst_21 : f32 to vector<1x128xf32>
    %36 = arith.minimumf %32, %35 : vector<1x128xf32>
    %37 = math.exp %36 : vector<1x128xf32>
    %38 = math.log1p %37 : vector<1x128xf32>
    %39 = arith.select %34, %32, %38 : vector<1x128xi1>, vector<1x128xf32>
    %c0_22 = arith.constant 0 : index
    %c0_23 = arith.constant 0 : index
    %40 = vector.load %arg7[%c0_22, %c0_23] : memref<1x128xf32, #tpu.memory_space<vmem>>, vector<1x128xf32>
    tpu.vector_store %arg7[%c0_22, %c0_23], %39 {strides = array<i32>} : memref<1x128xf32, #tpu.memory_space<vmem>>, vector<1x128xf32>,
    return
  }
  func.func @transform_0(%arg0: i32) -> (i32, i32) {
    %c0_i32 = arith.constant 0 : i32
    %c0_i32_0 = arith.constant 0 : i32
    return %c0_i32, %arg0 : i32, i32
  }
  func.func @transform_1(%arg0: i32) -> (i32, i32) {
    %c0_i32 = arith.constant 0 : i32
    %c0_i32_0 = arith.constant 0 : i32
    %c0_i32_1 = arith.constant 0 : i32
    return %c0_i32, %c0_i32_0 : i32, i32
  }
  func.func @transform_2(%arg0: i32) -> (i32, i32) {
    %c0_i32 = arith.constant 0 : i32
    %c0_i32_0 = arith.constant 0 : i32
    %c0_i32_1 = arith.constant 0 : i32
    return %c0_i32, %c0_i32_0 : i32, i32
  }
  func.func @transform_3(%arg0: i32) -> (i32, i32) {
    %c0_i32 = arith.constant 0 : i32
    %c0_i32_0 = arith.constant 0 : i32
    %c0_i32_1 = arith.constant 0 : i32
    return %c0_i32, %c0_i32_0 : i32, i32
  }
  func.func @transform_4(%arg0: i32) -> (i32, i32) {
    %c0_i32 = arith.constant 0 : i32
    %c0_i32_0 = arith.constant 0 : i32
    %c0_i32_1 = arith.constant 0 : i32
    return %c0_i32, %c0_i32_0 : i32, i32
  }
  func.func @transform_5(%arg0: i32) -> (i32, i32) {
    %c0_i32 = arith.constant 0 : i32
    %c0_i32_0 = arith.constant 0 : i32
    %c0_i32_1 = arith.constant 0 : i32
    return %c0_i32, %c0_i32_0 : i32, i32
  }
  func.func @transform_6(%arg0: i32) -> (i32, i32) {
    %c0_i32 = arith.constant 0 : i32
    %c0_i32_0 = arith.constant 0 : i32
    return %c0_i32, %arg0 : i32, i32
  }
}

</mosaic_0001>

<llo_original>
// kernel: methane_resnet_forward.1
$region0: #{methane_resnet_forward.1}
  #allocation0 [shape = 'u32[]', space=smem, size = 0x4, offset = 0x4, fixed_abs, tag = 'smem constant byte address 0x4 - core index']
  #allocation1 [shape = 'u32[144,128]{1,0:T(1,128)}', space=vmem, size = 0x12000, scoped, tag = 'internal scratch']
  %s0 = inlined_call_operand.vmem [shape: f32[32,128], index: 0, kind: input, shape index: {}]
  %s1 = inlined_call_operand.vmem [shape: f32[144,32], index: 1, kind: input, shape index: {}]
  %s2 = inlined_call_operand.vmem [shape: f32[64,128], index: 2, kind: input, shape index: {}]
  %s3 = inlined_call_operand.vmem [shape: f32[16,64], index: 3, kind: input, shape index: {}]
  %s4 = inlined_call_operand.vmem [shape: f32[16,1], index: 4, kind: input, shape index: {}]
  %s5 = inlined_call_operand.vmem [shape: f32[225,1], index: 5, kind: input, shape index: {}]
  %s6 = inlined_call_operand.vmem [shape: f32[1,128], index: 6, kind: output, shape index: {}]
  %s7 = sld [smem:[#allocation0]]
  $region34: #{methane_resnet_forward.1} parent=0
    _
  %s9 = ssub.s32 1, %s7
  %s10 = scalar_select 0, %s9, %s7
  // Predicated region
  $region2: #{methane_resnet_forward.1} parent=0 // pred_check
    _
  $region3: #{methane_resnet_forward.1} parent=0 // pred_check_branch
    %12 = sbr.rel (0) target = $region5
  $region4: #{methane_resnet_forward.1} parent=0 // pred_region
    _
  $region5: #{methane_resnet_forward.1} parent=0 // pred_fallthru
    _
  // Predicated region
  $region6: #{methane_resnet_forward.1} parent=0 // pred_check
    _
  $region7: #{methane_resnet_forward.1} parent=0 // pred_check_branch
    %14 = sbr.rel (0) target = $region9
  $region8: #{methane_resnet_forward.1} parent=0 // pred_region
    _
  $region9: #{methane_resnet_forward.1} parent=0 // pred_fallthru
    _
  // Predicated region
  $region10: #{methane_resnet_forward.1} parent=0 // pred_check
    _
  $region11: #{methane_resnet_forward.1} parent=0 // pred_check_branch
    %16 = sbr.rel (0) target = $region13
  $region12: #{methane_resnet_forward.1} parent=0 // pred_region
    _
  $region13: #{methane_resnet_forward.1} parent=0 // pred_fallthru
    _
  // Predicated region
  $region14: #{methane_resnet_forward.1} parent=0 // pred_check
    _
  $region15: #{methane_resnet_forward.1} parent=0 // pred_check_branch
    %18 = sbr.rel (0) target = $region17
  $region16: #{methane_resnet_forward.1} parent=0 // pred_region
    _
  $region17: #{methane_resnet_forward.1} parent=0 // pred_fallthru
    _
  // Predicated region
  $region18: #{methane_resnet_forward.1} parent=0 // pred_check
    _
  $region19: #{methane_resnet_forward.1} parent=0 // pred_check_branch
    %20 = sbr.rel (0) target = $region21
  $region20: #{methane_resnet_forward.1} parent=0 // pred_region
    _
  $region21: #{methane_resnet_forward.1} parent=0 // pred_fallthru
    _
  // Predicated region
  $region22: #{methane_resnet_forward.1} parent=0 // pred_check
    _
  $region23: #{methane_resnet_forward.1} parent=0 // pred_check_branch
    %22 = sbr.rel (0) target = $region25
  $region24: #{methane_resnet_forward.1} parent=0 // pred_region
    _
  $region25: #{methane_resnet_forward.1} parent=0 // pred_fallthru
    _
  %v23 = vld [vmem:[%s0] sm:$0xff]
  %v24 = vld [vmem:[%s0 + $0x8] sm:$0xff]
  %v25 = vld [vmem:[%s0 + $0x10] sm:$0xff]
  %v26 = vld [vmem:[%s0 + $0x18] sm:$0xff]
  %v27 = vld [vmem:[%s1] sm:$0xff]
  %v28 = vld [vmem:[%s1 + $0x8] sm:$0xff]
  %v29 = vld [vmem:[%s1 + $0x10] sm:$0xff]
  %v30 = vld [vmem:[%s1 + $0x18] sm:$0xff]
  %v31 = vld [vmem:[%s1 + $0x20] sm:$0xff]
  %v32 = vld [vmem:[%s1 + $0x28] sm:$0xff]
  %v33 = vld [vmem:[%s1 + $0x30] sm:$0xff]
  %v34 = vld [vmem:[%s1 + $0x38] sm:$0xff]
  %v35 = vld [vmem:[%s1 + $0x40] sm:$0xff]
  %v36 = vld [vmem:[%s1 + $0x48] sm:$0xff]
  %v37 = vld [vmem:[%s1 + $0x50] sm:$0xff]
  %v38 = vld [vmem:[%s1 + $0x58] sm:$0xff]
  %v39 = vld [vmem:[%s1 + $0x60] sm:$0xff]
  %v40 = vld [vmem:[%s1 + $0x68] sm:$0xff]
  %v41 = vld [vmem:[%s1 + $0x70] sm:$0xff]
  %v42 = vld [vmem:[%s1 + $0x78] sm:$0xff]
  %v43 = vld [vmem:[%s1 + $0x80] sm:$0xff]
  %v44 = vld [vmem:[%s1 + $0x88] sm:$0xff]
  %v45 = vld [vmem:[%s5] sm:$0xff]
  %v46 = vld [vmem:[%s5 + $0x8] sm:$0xff]
  %v47 = vld [vmem:[%s5 + $0x10] sm:$0xff]
  %v48 = vld [vmem:[%s5 + $0x18] sm:$0xff]
  %v49 = vld [vmem:[%s5 + $0x20] sm:$0xff]
  %v50 = vld [vmem:[%s5 + $0x28] sm:$0xff]
  %v51 = vld [vmem:[%s5 + $0x30] sm:$0xff]
  %v52 = vld [vmem:[%s5 + $0x38] sm:$0xff]
  %v53 = vld [vmem:[%s5 + $0x40] sm:$0xff]
  %v54 = vld [vmem:[%s5 + $0x48] sm:$0xff]
  %v55 = vld [vmem:[%s5 + $0x50] sm:$0xff]
  %v56 = vld [vmem:[%s5 + $0x58] sm:$0xff]
  %v57 = vld [vmem:[%s5 + $0x60] sm:$0xff]
  %v58 = vld [vmem:[%s5 + $0x68] sm:$0xff]
  %v59 = vld [vmem:[%s5 + $0x70] sm:$0xff]
  %v60 = vld [vmem:[%s5 + $0x78] sm:$0xff]
  %v61 = vld [vmem:[%s5 + $0x80] sm:$0xff]
  %v62 = vld [vmem:[%s5 + $0x88] sm:$0xff]
  %64 = vset.pattern.permute.xlu0 0
  %65 = vperm.xlu0 %64, %v45
  %v66 = vpop.permute.xlu0 %65
  %69 = vset.pattern.permute.xlu0 0
  %70 = vperm.xlu0 %69, %v46
  %v71 = vpop.permute.xlu0 %70
  %74 = vset.pattern.permute.xlu0 0
  %75 = vperm.xlu0 %74, %v47
  %v76 = vpop.permute.xlu0 %75
  %79 = vset.pattern.permute.xlu0 0
  %80 = vperm.xlu0 %79, %v48
  %v81 = vpop.permute.xlu0 %80
  %84 = vset.pattern.permute.xlu0 0
  %85 = vperm.xlu0 %84, %v49
  %v86 = vpop.permute.xlu0 %85
  %89 = vset.pattern.permute.xlu0 0
  %90 = vperm.xlu0 %89, %v50
  %v91 = vpop.permute.xlu0 %90
  %94 = vset.pattern.permute.xlu0 0
  %95 = vperm.xlu0 %94, %v51
  %v96 = vpop.permute.xlu0 %95
  %99 = vset.pattern.permute.xlu0 0
  %100 = vperm.xlu0 %99, %v52
  %v101 = vpop.permute.xlu0 %100
  %104 = vset.pattern.permute.xlu0 0
  %105 = vperm.xlu0 %104, %v53
  %v106 = vpop.permute.xlu0 %105
  %109 = vset.pattern.permute.xlu0 0
  %110 = vperm.xlu0 %109, %v54
  %v111 = vpop.permute.xlu0 %110
  %114 = vset.pattern.permute.xlu0 0
  %115 = vperm.xlu0 %114, %v55
  %v116 = vpop.permute.xlu0 %115
  %119 = vset.pattern.permute.xlu0 0
  %120 = vperm.xlu0 %119, %v56
  %v121 = vpop.permute.xlu0 %120
  %124 = vset.pattern.permute.xlu0 0
  %125 = vperm.xlu0 %124, %v57
  %v126 = vpop.permute.xlu0 %125
  %129 = vset.pattern.permute.xlu0 0
  %130 = vperm.xlu0 %129, %v58
  %v131 = vpop.permute.xlu0 %130
  %134 = vset.pattern.permute.xlu0 0
  %135 = vperm.xlu0 %134, %v59
  %v136 = vpop.permute.xlu0 %135
  %139 = vset.pattern.permute.xlu0 0
  %140 = vperm.xlu0 %139, %v60
  %v141 = vpop.permute.xlu0 %140
  %144 = vset.pattern.permute.xlu0 0
  %145 = vperm.xlu0 %144, %v61
  %v146 = vpop.permute.xlu0 %145
  %149 = vset.pattern.permute.xlu0 0
  %150 = vperm.xlu0 %149, %v62
  %v151 = vpop.permute.xlu0 %150
  %vm153 = vcmask 261120
  %v155 = vsel %vm153, %v27, 0
  %v158 = vsel %vm153, %v28, 0
  %v161 = vsel %vm153, %v29, 0
  %v164 = vsel %vm153, %v30, 0
  %v167 = vsel %vm153, %v31, 0
  %v170 = vsel %vm153, %v32, 0
  %v173 = vsel %vm153, %v33, 0
  %v176 = vsel %vm153, %v34, 0
  %v179 = vsel %vm153, %v35, 0
  %v182 = vsel %vm153, %v36, 0
  %v185 = vsel %vm153, %v37, 0
  %v188 = vsel %vm153, %v38, 0
  %v191 = vsel %vm153, %v39, 0
  %v194 = vsel %vm153, %v40, 0
  %v197 = vsel %vm153, %v41, 0
  %v200 = vsel %vm153, %v42, 0
  %v203 = vsel %vm153, %v43, 0
  %v206 = vsel %vm153, %v44, 0
  %208 = vmatprep.subr.mxu0 0.0
  %209 = vmatpush1.msra.mxu0 %v23
  %210 = vmatprep.subr.mxu0 0.0
  %211 = vmatpush1.msra.mxu0 %v24
  %212 = vmatprep.subr.mxu0 0.0
  %213 = vmatpush1.msra.mxu0 %v25
  %214 = vmatprep.subr.mxu0 0.0
  %215 = vmatpush1.msra.mxu0 %v26
  %216 = vmatprep.subr.mxu0 0.0
  %217 = vmatpush1.msra.mxu0 0.0
  %218 = vmatprep.subr.mxu0 0.0
  %219 = vmatpush1.msra.mxu0 0.0
  %220 = vmatprep.subr.mxu0 0.0
  %221 = vmatpush1.msra.mxu0 0.0
  %222 = vmatprep.subr.mxu0 0.0
  %223 = vmatpush1.msra.mxu0 0.0
  %224 = vmatprep.subr.mxu0 0.0
  %225 = vmatpush1.msra.mxu0 0.0
  %226 = vmatprep.subr.mxu0 0.0
  %227 = vmatpush1.msra.mxu0 0.0
  %228 = vmatprep.subr.mxu0 0.0
  %229 = vmatpush1.msra.mxu0 0.0
  %230 = vmatprep.subr.mxu0 0.0
  %231 = vmatpush1.msra.mxu0 0.0
  %232 = vmatprep.subr.mxu0 0.0
  %233 = vmatpush1.msra.mxu0 0.0
  %234 = vmatprep.subr.mxu0 0.0
  %235 = vmatpush1.msra.mxu0 0.0
  %236 = vmatprep.subr.mxu0 0.0
  %237 = vmatpush1.msra.mxu0 0.0
  %238 = vmatprep.subr.mxu0 0.0
  %239 = vmatpush1.msra.mxu0 0.0
  %240 = vmatprep.subr.mxu0 0.0
  %241 = vmatpush1.msra.mxu0 0.0
  %242 = vmatprep.subr.mxu0 0.0
  %243 = vmatpush1.msra.mxu0 0.0
  %244 = vmatprep.subr.mxu0 0.0
  %245 = vmatpush1.msra.mxu0 0.0
  %246 = vmatprep.subr.mxu0 0.0
  %247 = vmatpush1.msra.mxu0 0.0
  %248 = vmatprep.subr.mxu0 0.0
  %249 = vmatpush1.msra.mxu0 0.0
  %250 = vmatprep.subr.mxu0 0.0
  %251 = vmatpush1.msra.mxu0 0.0
  %252 = vmatprep.subr.mxu0 0.0
  %253 = vmatpush1.msra.mxu0 0.0
  %254 = vmatprep.subr.mxu0 0.0
  %255 = vmatpush1.msra.mxu0 0.0
  %256 = vmatprep.subr.mxu0 0.0
  %257 = vmatpush1.msra.mxu0 0.0
  %258 = vmatprep.subr.mxu0 0.0
  %259 = vmatpush1.msra.mxu0 0.0
  %260 = vmatprep.subr.mxu0 0.0
  %261 = vmatpush1.msra.mxu0 0.0
  %262 = vmatprep.subr.mxu0 0.0
  %263 = vmatpush1.msra.mxu0 0.0
  %264 = vmatprep.subr.mxu0 0.0
  %265 = vmatpush1.msra.mxu0 0.0
  %266 = vmatprep.subr.mxu0 0.0
  %267 = vmatpush1.msra.mxu0 0.0
  %268 = vmatprep.subr.mxu0 0.0
  %269 = vmatpush1.msra.mxu0 0.0
  %270 = vmatprep.subr.mxu0 0.0
  %271 = vmatpush1.msra.mxu0 0.0
  %272 = vmatprep.mubr.f32.mxu0 0.0
  %273 = vmatmul.mubr.f32.gmra.mrb[0].mxu0 %v155
  %v274 = vpop.f32.mrb[0].mxu0
  %v275 = vadd.f32 %v66, %v274
  %v276 = vpop.f32.mrb[0].mxu0
  %277 = vmatprep.mubr.f32.mxu0 0.0
  %278 = vmatmul.mubr.f32.gmra.mrb[0].mxu0 %v158
  %v279 = vpop.f32.mrb[0].mxu0
  %v280 = vadd.f32 %v71, %v279
  %v281 = vpop.f32.mrb[0].mxu0
  %282 = vmatprep.mubr.f32.mxu0 0.0
  %283 = vmatmul.mubr.f32.gmra.mrb[0].mxu0 %v161
  %v284 = vpop.f32.mrb[0].mxu0
  %v285 = vadd.f32 %v76, %v284
  %v286 = vpop.f32.mrb[0].mxu0
  %287 = vmatprep.mubr.f32.mxu0 0.0
  %288 = vmatmul.mubr.f32.gmra.mrb[0].mxu0 %v164
  %v289 = vpop.f32.mrb[0].mxu0
  %v290 = vadd.f32 %v81, %v289
  %v291 = vpop.f32.mrb[0].mxu0
  %292 = vmatprep.mubr.f32.mxu0 0.0
  %293 = vmatmul.mubr.f32.gmra.mrb[0].mxu0 %v167
  %v294 = vpop.f32.mrb[0].mxu0
  %v295 = vadd.f32 %v86, %v294
  %v296 = vpop.f32.mrb[0].mxu0
  %297 = vmatprep.mubr.f32.mxu0 0.0
  %298 = vmatmul.mubr.f32.gmra.mrb[0].mxu0 %v170
  %v299 = vpop.f32.mrb[0].mxu0
  %v300 = vadd.f32 %v91, %v299
  %v301 = vpop.f32.mrb[0].mxu0
  %302 = vmatprep.mubr.f32.mxu0 0.0
  %303 = vmatmul.mubr.f32.gmra.mrb[0].mxu0 %v173
  %v304 = vpop.f32.mrb[0].mxu0
  %v305 = vadd.f32 %v96, %v304
  %v306 = vpop.f32.mrb[0].mxu0
  %307 = vmatprep.mubr.f32.mxu0 0.0
  %308 = vmatmul.mubr.f32.gmra.mrb[0].mxu0 %v176
  %v309 = vpop.f32.mrb[0].mxu0
  %v310 = vadd.f32 %v101, %v309
  %v311 = vpop.f32.mrb[0].mxu0
  %312 = vmatprep.mubr.f32.mxu0 0.0
  %313 = vmatmul.mubr.f32.gmra.mrb[0].mxu0 %v179
  %v314 = vpop.f32.mrb[0].mxu0
  %v315 = vadd.f32 %v106, %v314
  %v316 = vpop.f32.mrb[0].mxu0
  %317 = vmatprep.mubr.f32.mxu0 0.0
  %318 = vmatmul.mubr.f32.gmra.mrb[0].mxu0 %v182
  %v319 = vpop.f32.mrb[0].mxu0
  %v320 = vadd.f32 %v111, %v319
  %v321 = vpop.f32.mrb[0].mxu0
  %322 = vmatprep.mubr.f32.mxu0 0.0
  %323 = vmatmul.mubr.f32.gmra.mrb[0].mxu0 %v185
  %v324 = vpop.f32.mrb[0].mxu0
  %v325 = vadd.f32 %v116, %v324
  %v326 = vpop.f32.mrb[0].mxu0
  %327 = vmatprep.mubr.f32.mxu0 0.0
  %328 = vmatmul.mubr.f32.gmra.mrb[0].mxu0 %v188
  %v329 = vpop.f32.mrb[0].mxu0
  %v330 = vadd.f32 %v121, %v329
  %v331 = vpop.f32.mrb[0].mxu0
  %332 = vmatprep.mubr.f32.mxu0 0.0
  %333 = vmatmul.mubr.f32.gmra.mrb[0].mxu0 %v191
  %v334 = vpop.f32.mrb[0].mxu0
  %v335 = vadd.f32 %v126, %v334
  %v336 = vpop.f32.mrb[0].mxu0
  %337 = vmatprep.mubr.f32.mxu0 0.0
  %338 = vmatmul.mubr.f32.gmra.mrb[0].mxu0 %v194
  %v339 = vpop.f32.mrb[0].mxu0
  %v340 = vadd.f32 %v131, %v339
  %v341 = vpop.f32.mrb[0].mxu0
  %342 = vmatprep.mubr.f32.mxu0 0.0
  %343 = vmatmul.mubr.f32.gmra.mrb[0].mxu0 %v197
  %v344 = vpop.f32.mrb[0].mxu0
  %v345 = vadd.f32 %v136, %v344
  %v346 = vpop.f32.mrb[0].mxu0
  %347 = vmatprep.mubr.f32.mxu0 0.0
  %348 = vmatmul.mubr.f32.gmra.mrb[0].mxu0 %v200
  %v349 = vpop.f32.mrb[0].mxu0
  %v350 = vadd.f32 %v141, %v349
  %v351 = vpop.f32.mrb[0].mxu0
  %352 = vmatprep.mubr.f32.mxu0 0.0
  %353 = vmatmul.mubr.f32.gmra.mrb[0].mxu0 %v203
  %v354 = vpop.f32.mrb[0].mxu0
  %v355 = vadd.f32 %v146, %v354
  %v356 = vpop.f32.mrb[0].mxu0
  %357 = vmatprep.mubr.f32.mxu0 0.0
  %358 = vmatmul.mubr.f32.gmra.mrb[0].mxu0 %v206
  %v359 = vpop.f32.mrb[0].mxu0
  %v360 = vadd.f32 %v151, %v359
  %v361 = vpop.f32.mrb[0].mxu0
  %362 = vdwg.mxu0
  %v363 = vmax.f32 %v275, 0.0
  %v364 = vmax.f32 %v280, 0.0
  %v365 = vmax.f32 %v285, 0.0
  %v366 = vmax.f32 %v290, 0.0
  %v367 = vmax.f32 %v295, 0.0
  %v368 = vmax.f32 %v300, 0.0
  %v369 = vmax.f32 %v305, 0.0
  %v370 = vmax.f32 %v310, 0.0
  %v371 = vmax.f32 %v315, 0.0
  %v372 = vmax.f32 %v320, 0.0
  %v373 = vmax.f32 %v325, 0.0
  %v374 = vmax.f32 %v330, 0.0
  %v375 = vmax.f32 %v335, 0.0
  %v376 = vmax.f32 %v340, 0.0
  %v377 = vmax.f32 %v345, 0.0
  %v378 = vmax.f32 %v350, 0.0
  %v379 = vmax.f32 %v355, 0.0
  %v380 = vmax.f32 %v360, 0.0
  %v381 = vld [vmem:[%s2] sm:$0xff]
  %v382 = vld [vmem:[%s2 + $0x8] sm:$0xff]
  %v383 = vld [vmem:[%s2 + $0x10] sm:$0xff]
  %v384 = vld [vmem:[%s2 + $0x18] sm:$0xff]
  %v385 = vld [vmem:[%s2 + $0x20] sm:$0xff]
  %v386 = vld [vmem:[%s2 + $0x28] sm:$0xff]
  %v387 = vld [vmem:[%s2 + $0x30] sm:$0xff]
  %v388 = vld [vmem:[%s2 + $0x38] sm:$0xff]
  %v389 = vld [vmem:[%s5 + $0x90] sm:$0xff]
  %v390 = vld [vmem:[%s5 + $0x98] sm:$0xff]
  %v391 = vld [vmem:[%s5 + $0xa0] sm:$0xff]
  %v392 = vld [vmem:[%s5 + $0xa8] sm:$0xff]
  %v393 = vld [vmem:[%s5 + $0xb0] sm:$0xff]
  %v394 = vld [vmem:[%s5 + $0xb8] sm:$0xff]
  %v395 = vld [vmem:[%s5 + $0xc0] sm:$0xff]
  %v396 = vld [vmem:[%s5 + $0xc8] sm:$0xff]
  %398 = vset.pattern.permute.xlu0 0
  %399 = vperm.xlu0 %398, %v389
  %v400 = vpop.permute.xlu0 %399
  %403 = vset.pattern.permute.xlu0 0
  %404 = vperm.xlu0 %403, %v390
  %v405 = vpop.permute.xlu0 %404
  %408 = vset.pattern.permute.xlu0 0
  %409 = vperm.xlu0 %408, %v391
  %v410 = vpop.permute.xlu0 %409
  %413 = vset.pattern.permute.xlu0 0
  %414 = vperm.xlu0 %413, %v392
  %v415 = vpop.permute.xlu0 %414
  %418 = vset.pattern.permute.xlu0 0
  %419 = vperm.xlu0 %418, %v393
  %v420 = vpop.permute.xlu0 %419
  %423 = vset.pattern.permute.xlu0 0
  %424 = vperm.xlu0 %423, %v394
  %v425 = vpop.permute.xlu0 %424
  %428 = vset.pattern.permute.xlu0 0
  %429 = vperm.xlu0 %428, %v395
  %v430 = vpop.permute.xlu0 %429
  %433 = vset.pattern.permute.xlu0 0
  %434 = vperm.xlu0 %433, %v396
  %v435 = vpop.permute.xlu0 %434
  %437 = vmatprep.subr.mxu0 0.0
  %438 = vmatpush1.msra.mxu0 %v363
  %439 = vmatprep.subr.mxu0 0.0
  %440 = vmatpush1.msra.mxu0 %v364
  %441 = vmatprep.subr.mxu0 0.0
  %442 = vmatpush1.msra.mxu0 %v365
  %443 = vmatprep.subr.mxu0 0.0
  %444 = vmatpush1.msra.mxu0 %v366
  %445 = vmatprep.subr.mxu0 0.0
  %446 = vmatpush1.msra.mxu0 %v367
  %447 = vmatprep.subr.mxu0 0.0
  %448 = vmatpush1.msra.mxu0 %v368
  %449 = vmatprep.subr.mxu0 0.0
  %450 = vmatpush1.msra.mxu0 %v369
  %451 = vmatprep.subr.mxu0 0.0
  %452 = vmatpush1.msra.mxu0 %v370
  %453 = vmatprep.subr.mxu0 0.0
  %454 = vmatpush1.msra.mxu0 %v371
  %455 = vmatprep.subr.mxu0 0.0
  %456 = vmatpush1.msra.mxu0 %v372
  %457 = vmatprep.subr.mxu0 0.0
  %458 = vmatpush1.msra.mxu0 %v373
  %459 = vmatprep.subr.mxu0 0.0
  %460 = vmatpush1.msra.mxu0 %v374
  %461 = vmatprep.subr.mxu0 0.0
  %462 = vmatpush1.msra.mxu0 %v375
  %463 = vmatprep.subr.mxu0 0.0
  %464 = vmatpush1.msra.mxu0 %v376
  %465 = vmatprep.subr.mxu0 0.0
  %466 = vmatpush1.msra.mxu0 %v377
  %467 = vmatprep.subr.mxu0 0.0
  %468 = vmatpush1.msra.mxu0 %v378
  %469 = vmatprep.subr.mxu0 0.0
  %470 = vmatpush1.msra.mxu0 0.0
  %471 = vmatprep.subr.mxu0 0.0
  %472 = vmatpush1.msra.mxu0 0.0
  %473 = vmatprep.subr.mxu0 0.0
  %474 = vmatpush1.msra.mxu0 0.0
  %475 = vmatprep.subr.mxu0 0.0
  %476 = vmatpush1.msra.mxu0 0.0
  %477 = vmatprep.subr.mxu0 0.0
  %478 = vmatpush1.msra.mxu0 0.0
  %479 = vmatprep.subr.mxu0 0.0
  %480 = vmatpush1.msra.mxu0 0.0
  %481 = vmatprep.subr.mxu0 0.0
  %482 = vmatpush1.msra.mxu0 0.0
  %483 = vmatprep.subr.mxu0 0.0
  %484 = vmatpush1.msra.mxu0 0.0
  %485 = vmatprep.subr.mxu0 0.0
  %486 = vmatpush1.msra.mxu0 0.0
  %487 = vmatprep.subr.mxu0 0.0
  %488 = vmatpush1.msra.mxu0 0.0
  %489 = vmatprep.subr.mxu0 0.0
  %490 = vmatpush1.msra.mxu0 0.0
  %491 = vmatprep.subr.mxu0 0.0
  %492 = vmatpush1.msra.mxu0 0.0
  %493 = vmatprep.subr.mxu0 0.0
  %494 = vmatpush1.msra.mxu0 0.0
  %495 = vmatprep.subr.mxu0 0.0
  %496 = vmatpush1.msra.mxu0 0.0
  %497 = vmatprep.subr.mxu0 0.0
  %498 = vmatpush1.msra.mxu0 0.0
  %499 = vmatprep.subr.mxu0 0.0
  %500 = vmatpush1.msra.mxu0 0.0
  %501 = vmatprep.mubr.f32.mxu0 0.0
  %502 = vmatmul.mubr.f32.gmra.mrb[0].mxu0 %v381
  %v503 = vpop.f32.mrb[0].mxu0
  %v504 = vadd.f32 %v400, %v503
  %v505 = vpop.f32.mrb[0].mxu0
  %506 = vmatprep.mubr.f32.mxu0 0.0
  %507 = vmatmul.mubr.f32.gmra.mrb[0].mxu0 %v382
  %v508 = vpop.f32.mrb[0].mxu0
  %v509 = vadd.f32 %v405, %v508
  %v510 = vpop.f32.mrb[0].mxu0
  %511 = vmatprep.mubr.f32.mxu0 0.0
  %512 = vmatmul.mubr.f32.gmra.mrb[0].mxu0 %v383
  %v513 = vpop.f32.mrb[0].mxu0
  %v514 = vadd.f32 %v410, %v513
  %v515 = vpop.f32.mrb[0].mxu0
  %516 = vmatprep.mubr.f32.mxu0 0.0
  %517 = vmatmul.mubr.f32.gmra.mrb[0].mxu0 %v384
  %v518 = vpop.f32.mrb[0].mxu0
  %v519 = vadd.f32 %v415, %v518
  %v520 = vpop.f32.mrb[0].mxu0
  %521 = vmatprep.mubr.f32.mxu0 0.0
  %522 = vmatmul.mubr.f32.gmra.mrb[0].mxu0 %v385
  %v523 = vpop.f32.mrb[0].mxu0
  %v524 = vadd.f32 %v420, %v523
  %v525 = vpop.f32.mrb[0].mxu0
  %526 = vmatprep.mubr.f32.mxu0 0.0
  %527 = vmatmul.mubr.f32.gmra.mrb[0].mxu0 %v386
  %v528 = vpop.f32.mrb[0].mxu0
  %v529 = vadd.f32 %v425, %v528
  %v530 = vpop.f32.mrb[0].mxu0
  %531 = vmatprep.mubr.f32.mxu0 0.0
  %532 = vmatmul.mubr.f32.gmra.mrb[0].mxu0 %v387
  %v533 = vpop.f32.mrb[0].mxu0
  %v534 = vadd.f32 %v430, %v533
  %v535 = vpop.f32.mrb[0].mxu0
  %536 = vmatprep.mubr.f32.mxu0 0.0
  %537 = vmatmul.mubr.f32.gmra.mrb[0].mxu0 %v388
  %v538 = vpop.f32.mrb[0].mxu0
  %v539 = vadd.f32 %v435, %v538
  %v540 = vpop.f32.mrb[0].mxu0
  %541 = vdwg.mxu0
  %v542 = vmax.f32 %v504, 0.0
  %v543 = vmax.f32 %v509, 0.0
  %v544 = vmax.f32 %v514, 0.0
  %v545 = vmax.f32 %v519, 0.0
  %v546 = vmax.f32 %v524, 0.0
  %v547 = vmax.f32 %v529, 0.0
  %v548 = vmax.f32 %v534, 0.0
  %v549 = vmax.f32 %v539, 0.0
  %v550 = vld [vmem:[%s3] sm:$0xff]
  %v551 = vld [vmem:[%s3 + $0x8] sm:$0xff]
  %v552 = vld [vmem:[%s5 + $0xd0] sm:$0xff]
  %v553 = vld [vmem:[%s5 + $0xd8] sm:$0xff]
  %555 = vset.pattern.permute.xlu0 0
  %556 = vperm.xlu0 %555, %v552
  %v557 = vpop.permute.xlu0 %556
  %560 = vset.pattern.permute.xlu0 0
  %561 = vperm.xlu0 %560, %v553
  %v562 = vpop.permute.xlu0 %561
  %vm564 = vcmask 523264
  %v566 = vsel %vm564, %v550, 0
  %v569 = vsel %vm564, %v551, 0
  %571 = vmatprep.subr.mxu0 0.0
  %572 = vmatpush1.msra.mxu0 %v542
  %573 = vmatprep.subr.mxu0 0.0
  %574 = vmatpush1.msra.mxu0 %v543
  %575 = vmatprep.subr.mxu0 0.0
  %576 = vmatpush1.msra.mxu0 %v544
  %577 = vmatprep.subr.mxu0 0.0
  %578 = vmatpush1.msra.mxu0 %v545
  %579 = vmatprep.subr.mxu0 0.0
  %580 = vmatpush1.msra.mxu0 %v546
  %581 = vmatprep.subr.mxu0 0.0
  %582 = vmatpush1.msra.mxu0 %v547
  %583 = vmatprep.subr.mxu0 0.0
  %584 = vmatpush1.msra.mxu0 %v548
  %585 = vmatprep.subr.mxu0 0.0
  %586 = vmatpush1.msra.mxu0 %v549
  %587 = vmatprep.subr.mxu0 0.0
  %588 = vmatpush1.msra.mxu0 0.0
  %589 = vmatprep.subr.mxu0 0.0
  %590 = vmatpush1.msra.mxu0 0.0
  %591 = vmatprep.subr.mxu0 0.0
  %592 = vmatpush1.msra.mxu0 0.0
  %593 = vmatprep.subr.mxu0 0.0
  %594 = vmatpush1.msra.mxu0 0.0
  %595 = vmatprep.subr.mxu0 0.0
  %596 = vmatpush1.msra.mxu0 0.0
  %597 = vmatprep.subr.mxu0 0.0
  %598 = vmatpush1.msra.mxu0 0.0
  %599 = vmatprep.subr.mxu0 0.0
  %600 = vmatpush1.msra.mxu0 0.0
  %601 = vmatprep.subr.mxu0 0.0
  %602 = vmatpush1.msra.mxu0 0.0
  %603 = vmatprep.subr.mxu0 0.0
  %604 = vmatpush1.msra.mxu0 0.0
  %605 = vmatprep.subr.mxu0 0.0
  %606 = vmatpush1.msra.mxu0 0.0
  %607 = vmatprep.subr.mxu0 0.0
  %608 = vmatpush1.msra.mxu0 0.0
  %609 = vmatprep.subr.mxu0 0.0
  %610 = vmatpush1.msra.mxu0 0.0
  %611 = vmatprep.subr.mxu0 0.0
  %612 = vmatpush1.msra.mxu0 0.0
  %613 = vmatprep.subr.mxu0 0.0
  %614 = vmatpush1.msra.mxu0 0.0
  %615 = vmatprep.subr.mxu0 0.0
  %616 = vmatpush1.msra.mxu0 0.0
  %617 = vmatprep.subr.mxu0 0.0
  %618 = vmatpush1.msra.mxu0 0.0
  %619 = vmatprep.subr.mxu0 0.0
  %620 = vmatpush1.msra.mxu0 0.0
  %621 = vmatprep.subr.mxu0 0.0
  %622 = vmatpush1.msra.mxu0 0.0
  %623 = vmatprep.subr.mxu0 0.0
  %624 = vmatpush1.msra.mxu0 0.0
  %625 = vmatprep.subr.mxu0 0.0
  %626 = vmatpush1.msra.mxu0 0.0
  %627 = vmatprep.subr.mxu0 0.0
  %628 = vmatpush1.msra.mxu0 0.0
  %629 = vmatprep.subr.mxu0 0.0
  %630 = vmatpush1.msra.mxu0 0.0
  %631 = vmatprep.subr.mxu0 0.0
  %632 = vmatpush1.msra.mxu0 0.0
  %633 = vmatprep.subr.mxu0 0.0
  %634 = vmatpush1.msra.mxu0 0.0
  %635 = vmatprep.mubr.f32.mxu0 0.0
  %636 = vmatmul.mubr.f32.gmra.mrb[0].mxu0 %v566
  %v637 = vpop.f32.mrb[0].mxu0
  %v638 = vadd.f32 %v557, %v637
  %v639 = vpop.f32.mrb[0].mxu0
  %640 = vmatprep.mubr.f32.mxu0 0.0
  %641 = vmatmul.mubr.f32.gmra.mrb[0].mxu0 %v569
  %v642 = vpop.f32.mrb[0].mxu0
  %v643 = vadd.f32 %v562, %v642
  %v644 = vpop.f32.mrb[0].mxu0
  %645 = vdwg.mxu0
  %v646 = vmax.f32 %v638, 0.0
  %v647 = vmax.f32 %v643, 0.0
  %v648 = vadd.f32 %v646, %v379
  %v649 = vadd.f32 %v647, %v380
  %v650 = vld [vmem:[%s4] sm:$0xff]
  %v651 = vld [vmem:[%s4 + $0x8] sm:$0xff]
  %653 = vset.pattern.permute.xlu0 0
  %654 = vperm.xlu0 %653, %v650
  %v655 = vpop.permute.xlu0 %654
  %658 = vset.pattern.permute.xlu0 0
  %659 = vperm.xlu0 %658, %v651
  %v660 = vpop.permute.xlu0 %659
  %v662 = vmul.f32 %v648, %v655
  %v663 = vmul.f32 %v649, %v660
  %v664 = vadd.f32 %v662, %v663
  %v665 = vrot.slane %v664, 4
  %v666 = vadd.f32 %v664, %v665
  %v667 = vrot.slane %v666, 2
  %v668 = vadd.f32 %v666, %v667
  %v669 = vrot.slane %v668, 1
  %v670 = vadd.f32 %v668, %v669
  %v671 = vld [vmem:[%s5 + $0xe0] sm:$0x1]
  %673 = vset.pattern.permute.xlu0 0
  %674 = vperm.xlu0 %673, %v671
  %v675 = vpop.permute.xlu0 %674
  %v677 = vadd.f32 %v670, %v675
  %vm678 = vcmp.gt.f32.partialorder %v677, 20.0
  %v679 = vmin.f32 %v677, 20.0
  %v680 = vmul.f32 %v679, 1.442695
  %v681 = vpow.pop %v680
  %v682 = vadd.f32 %v681, 1.0
  %v683 = vlog2.pop %v682
  %v684 = vmul.f32 %v683, 0.6931472
  %v685 = vmul.f32 -0.5, %v681
  %v686 = vadd.f32 %v685, 1.0
  %v687 = vmul.f32 %v686, %v681
  %v688 = vand.u32 2147483647, %v681
  %vm689 = vcmp.lt.f32.partialorder %v688, 0.0004427343
  %v690 = vsel %vm689, %v687, %v684
  %v691 = vsel %vm678, %v677, %v690
  %692 = vst [vmem:[%s6] sm:$0x1] %v691
  // Predicated region
  $region26: #{methane_resnet_forward.1} parent=0 // pred_check
    _
  $region27: #{methane_resnet_forward.1} parent=0 // pred_check_branch
    %694 = sbr.rel (0) target = $region29
  $region28: #{methane_resnet_forward.1} parent=0 // pred_region
    _
  $region29: #{methane_resnet_forward.1} parent=0 // pred_fallthru
    _
  // Predicated region
  $region30: #{methane_resnet_forward.1} parent=0 // pred_check
    _
  $region31: #{methane_resnet_forward.1} parent=0 // pred_check_branch
    %696 = sbr.rel (0) target = $region33
  $region32: #{methane_resnet_forward.1} parent=0 // pred_region
    _
  $region33: #{methane_resnet_forward.1} parent=0 // pred_fallthru
    _

</llo_original>
